<compile_context>
chip_gen: v5e
topology: v5e:2x2
jax: 0.10.0
libtpu: 0.0.40
codegen_flags: <defaults>
</compile_context>

<pallas_src>
import functools

import jax
import jax.numpy as jnp
from jax.experimental import pallas as pl
from jax.experimental.pallas import tpu as pltpu


LANE = 128
HID1 = 128   # shared trunk width
HID2 = 64    # per-head hidden width (actor 64 + critic 64 = 128 fused)


def _round_up(n, m):
    return ((n + m - 1) // m) * m


def _pick_tile(batch, cap):
    """Batch tile: multiple of 8, <= cap, and >=2 grid steps when possible."""
    b8 = _round_up(batch, 8)
    half = _round_up(pl.cdiv(b8, 2), 8)   # two blocks cover the batch
    return max(8, min(cap, half))


# ----------------------------------------------------------------------------
# Kernel: one batch tile per grid step, all weights resident in VMEM.
# ----------------------------------------------------------------------------
def actor_critic_kernel(
    x_ref,                 # (TB, obs_dim)        input dtype (cast in-kernel)
    w1_ref, b1_ref,        # (obs_dim, 128), (1, 128)
    w2_ref, b2_ref,        # (128, 128) = [wa1 | wc1], (1, 128)
    w3_ref, b3_ref,        # (128, 128) = blockdiag(wa2, wc2) padded, (1, 128)
    out_ref,               # (TB, 128) = [logits | value | 0-pad]
):
    # cast the tile (not the whole array in the wrapper) to the compute dtype
    x = x_ref[...].astype(w1_ref.dtype)

    # shared trunk: Linear + ReLU (f32 accumulate, f32 bias/activation)
    h = jnp.dot(x, w1_ref[...], preferred_element_type=jnp.float32) + b1_ref[...]
    h = jnp.maximum(h, 0.0)

    # fused head hidden: [actor_hidden | critic_hidden] + ReLU
    h2 = (
        jnp.dot(h.astype(w2_ref.dtype), w2_ref[...],
                preferred_element_type=jnp.float32)
        + b2_ref[...]
    )
    h2 = jnp.maximum(h2, 0.0)

    # fused head output: [logits | value | zeros] — lane-dense store
    out_ref[...] = (
        jnp.dot(h2.astype(w3_ref.dtype), w3_ref[...],
                preferred_element_type=jnp.float32)
        + b3_ref[...]
    ).astype(out_ref.dtype)


# ----------------------------------------------------------------------------
# Host-side packing of PyTorch-layout params into fused tensors.
# ----------------------------------------------------------------------------
def pack_params(p, *, use_bf16=True):
    """p: dict of (in,out) weights and (1,out) biases (un-fused, f32)."""
    obs_dim = p["w1"].shape[0]
    act_dim = p["wa2"].shape[1]
    assert act_dim + 1 <= LANE, "fused head output must fit in one 128-lane slab"

    wdtype = jnp.bfloat16 if use_bf16 else jnp.float32

    # layer 1: native obs width (no lane padding)
    w1 = p["w1"].astype(wdtype)                                        # (obs, 128)
    b1 = p["b1"].astype(jnp.float32)                                   # (1, 128)

    # layer 2: fuse actor/critic hidden layers side by side
    w2 = jnp.concatenate([p["wa1"], p["wc1"]], axis=1).astype(wdtype)  # (128, 128)
    b2 = jnp.concatenate([p["ba1"], p["bc1"]], axis=1).astype(jnp.float32)

    # layer 3: block-diagonal fusion, padded to 128 output lanes
    w3 = jnp.zeros((2 * HID2, LANE), jnp.float32)
    w3 = w3.at[:HID2, :act_dim].set(p["wa2"])                          # actor out
    w3 = w3.at[HID2:, act_dim:act_dim + 1].set(p["wc2"])               # critic out
    b3 = jnp.zeros((1, LANE), jnp.float32)
    b3 = b3.at[0, :act_dim].set(p["ba2"][0])
    b3 = b3.at[0, act_dim].set(p["bc2"][0, 0])

    return dict(
        w1=w1, b1=b1,
        w2=w2, b2=b2,
        w3=w3.astype(wdtype), b3=b3,
        act_dim=act_dim,
    )


# ----------------------------------------------------------------------------
# Wrapper: batch-tiled pallas_call, lane-dense packed output, slice at the end.
# ----------------------------------------------------------------------------
@functools.partial(jax.jit, static_argnames=("act_dim", "tb"))
def _forward(x, w1, b1, w2, b2, w3, b3, *, act_dim, tb):
    batch, obs_dim = x.shape
    out_dtype = w1.dtype                      # slab dtype follows compute dtype
    grid = (pl.cdiv(batch, tb),)              # ragged last block handled by Pallas

    def wspec(shape):                         # resident weights/biases
        return pl.BlockSpec(shape, lambda i: (0, 0))

    flops = 2 * batch * (obs_dim * HID1 + HID1 * HID1 + HID1 * LANE)
    bytes_accessed = (
        x.size * x.dtype.itemsize
        + batch * LANE * jnp.dtype(out_dtype).itemsize
        + sum(a.size * a.dtype.itemsize for a in (w1, b1, w2, b2, w3, b3))
    )

    out = pl.pallas_call(
        actor_critic_kernel,
        out_shape=jax.ShapeDtypeStruct((batch, LANE), out_dtype),
        grid=grid,
        in_specs=[
            pl.BlockSpec((tb, obs_dim), lambda i: (i, 0)),   # x tile (pipelined)
            wspec((obs_dim, HID1)), wspec((1, HID1)),        # w1, b1
            wspec((HID1, HID1)), wspec((1, HID1)),           # w2, b2
            wspec((2 * HID2, LANE)), wspec((1, LANE)),       # w3, b3
        ],
        out_specs=pl.BlockSpec((tb, LANE), lambda i: (i, 0)),
        compiler_params=pltpu.CompilerParams(
            dimension_semantics=("parallel",),               # megacore on v7x
            vmem_limit_bytes=32 << 20,
        ),
        cost_estimate=pl.CostEstimate(
            flops=flops, transcendentals=0, bytes_accessed=bytes_accessed),
    )(x, w1, b1, w2, b2, w3, b3)

    # Slice logits/value out of the lane-dense slab (drops zero-padded lanes,
    # so downstream softmax never sees padded logits).
    logits = out[:, :act_dim]
    value = out[:, act_dim:act_dim + 1]
    return logits, value


def actor_critic_forward(x, packed, *, tb=2048):
    """x: (B, obs_dim) float32 or bfloat16.  packed: output of pack_params()."""
    batch = x.shape[0]
    TB = _pick_tile(batch, tb)
    return _forward(
        x,
        packed["w1"], packed["b1"],
        packed["w2"], packed["b2"],
        packed["w3"], packed["b3"],
        act_dim=packed["act_dim"], tb=TB,
    )


# ----------------------------------------------------------------------------
# Parameter init (PyTorch nn.Linear default: U(-1/sqrt(fan_in), 1/sqrt(fan_in)))
# ----------------------------------------------------------------------------
def init_params(key, obs_dim, act_dim):
    def linear(key, fan_in, fan_out):
        kw, kb = jax.random.split(key)
        bound = 1.0 / jnp.sqrt(jnp.float32(fan_in))
        w = jax.random.uniform(kw, (fan_in, fan_out), jnp.float32, -bound, bound)
        b = jax.random.uniform(kb, (1, fan_out), jnp.float32, -bound, bound)
        return w, b

    k1, k2, k3, k4, k5 = jax.random.split(key, 5)
    w1, b1 = linear(k1, obs_dim, HID1)     # shared
    wa1, ba1 = linear(k2, HID1, HID2)      # actor hidden
    wa2, ba2 = linear(k3, HID2, act_dim)   # actor out
    wc1, bc1 = linear(k4, HID1, HID2)      # critic hidden
    wc2, bc2 = linear(k5, HID2, 1)         # critic out
    return dict(
        w1=w1, b1=b1,
        wa1=wa1, ba1=ba1, wa2=wa2, ba2=ba2,
        wc1=wc1, bc1=bc1, wc2=wc2, bc2=bc2,
    )


def reference_forward(x, p):
    h = jnp.maximum(x @ p["w1"] + p["b1"], 0.0)
    ha = jnp.maximum(h @ p["wa1"] + p["ba1"], 0.0)
    logits = ha @ p["wa2"] + p["ba2"]
    hc = jnp.maximum(h @ p["wc1"] + p["bc1"], 0.0)
    value = hc @ p["wc2"] + p["bc2"]
    return logits, value


if __name__ == "__main__":
    key = jax.random.PRNGKey(0)
    kx, kp = jax.random.split(key)

    batch, obs_dim, act_dim = 8, 32, 8
    x = jax.random.normal(kx, (batch, obs_dim), dtype=jnp.float32)
    params = init_params(kp, obs_dim, act_dim)
    ref_logits, ref_value = reference_forward(x, params)

    # ---- exact-match check: f32 weights / f32 I/O ----
    packed_f32 = pack_params(params, use_bf16=False)
    logits, value = actor_critic_forward(x, packed_f32)
    jax.block_until_ready((logits, value))
    assert logits.shape == (batch, act_dim) and value.shape == (batch, 1)
    assert jnp.allclose(logits, ref_logits, atol=1e-5, rtol=1e-5)
    assert jnp.allclose(value, ref_value, atol=1e-5, rtol=1e-5)

    # ---- recommended default path: bf16 x / weights / output, f32 accumulate ----
    packed_bf16 = pack_params(params, use_bf16=True)
    logits_b, value_b = actor_critic_forward(x.astype(jnp.bfloat16), packed_bf16)
    jax.block_until_ready((logits_b, value_b))
    assert jnp.allclose(logits_b.astype(jnp.float32), ref_logits, atol=5e-2, rtol=5e-2)
    assert jnp.allclose(value_b.astype(jnp.float32), ref_value, atol=5e-2, rtol=5e-2)

    # ---- ragged, multi-step grid (batch not a multiple of the tile) ----
    b2 = 37
    x2 = jax.random.normal(kx, (b2, obs_dim), dtype=jnp.float32)
    l2, v2 = actor_critic_forward(x2, packed_f32)
    jax.block_until_ready((l2, v2))
    rl2, rv2 = reference_forward(x2, params)
    assert l2.shape == (b2, act_dim) and v2.shape == (b2, 1)
    assert jnp.allclose(l2, rl2, atol=1e-5, rtol=1e-5)
    assert jnp.allclose(v2, rv2, atol=1e-5, rtol=1e-5)

    print("KERNEL_OK")
</pallas_src>

<mosaic_0001>
module attributes {stable_mosaic.version = 11 : i64} {
  func.func @actor_critic_kernel(%arg0: i32, %arg1: memref<8x32xf32, #tpu.memory_space<vmem>>, %arg2: memref<32x128xf32, #tpu.memory_space<vmem>>, %arg3: memref<1x128xf32, #tpu.memory_space<vmem>>, %arg4: memref<128x128xf32, #tpu.memory_space<vmem>>, %arg5: memref<1x128xf32, #tpu.memory_space<vmem>>, %arg6: memref<128x128xf32, #tpu.memory_space<vmem>>, %arg7: memref<1x128xf32, #tpu.memory_space<vmem>>, %arg8: memref<8x128xf32, #tpu.memory_space<vmem>>) attributes {dimension_semantics = [#tpu.dimension_semantics<parallel>], iteration_bounds = array<i64: 1>, scalar_prefetch = 0 : i64, scratch_operands = 0 : i64, tpu.core_type = #tpu.core_type<tc>, window_params = [{transform_indices = @transform_0, window_bounds = array<i64: 8, 32>}, {pipeline_mode = #tpu.pipeline_mode<synchronous>, transform_indices = @transform_1, window_bounds = array<i64: 32, 128>}, {pipeline_mode = #tpu.pipeline_mode<synchronous>, transform_indices = @transform_2, window_bounds = array<i64: 1, 128>}, {pipeline_mode = #tpu.pipeline_mode<synchronous>, transform_indices = @transform_3, window_bounds = array<i64: 128, 128>}, {pipeline_mode = #tpu.pipeline_mode<synchronous>, transform_indices = @transform_4, window_bounds = array<i64: 1, 128>}, {pipeline_mode = #tpu.pipeline_mode<synchronous>, transform_indices = @transform_5, window_bounds = array<i64: 128, 128>}, {pipeline_mode = #tpu.pipeline_mode<synchronous>, transform_indices = @transform_6, window_bounds = array<i64: 1, 128>}, {transform_indices = @transform_7, window_bounds = array<i64: 8, 128>}]} {
    %c0 = arith.constant 0 : index
    %c0_0 = arith.constant 0 : index
    %0 = vector.load %arg1[%c0, %c0_0] : memref<8x32xf32, #tpu.memory_space<vmem>>, vector<8x32xf32>
    %c0_1 = arith.constant 0 : index
    %c0_2 = arith.constant 0 : index
    %1 = vector.load %arg2[%c0_1, %c0_2] : memref<32x128xf32, #tpu.memory_space<vmem>>, vector<32x128xf32>
    %cst = arith.constant dense<0.000000e+00> : vector<8x128xf32>
    %2 = tpu.matmul %0, %1, %cst {dimension_numbers = #tpu.dot_dimension_numbers<[1], [0], [0], [1], [0, 0, 1, 1], [], []>} : vector<8x32xf32>, vector<32x128xf32>, vector<8x128xf32> -> vector<8x128xf32>
    %c0_3 = arith.constant 0 : index
    %c0_4 = arith.constant 0 : index
    %3 = vector.load %arg3[%c0_3, %c0_4] : memref<1x128xf32, #tpu.memory_space<vmem>>, vector<1x128xf32>
    %4 = vector.broadcast %3 : vector<1x128xf32> to vector<8x128xf32>
    %5 = arith.addf %2, %4 : vector<8x128xf32>
    %cst_5 = arith.constant 0.000000e+00 : f32
    %6 = vector.broadcast %cst_5 : f32 to vector<8x128xf32>
    %7 = arith.maximumf %5, %6 : vector<8x128xf32>
    %c0_6 = arith.constant 0 : index
    %c0_7 = arith.constant 0 : index
    %8 = vector.load %arg4[%c0_6, %c0_7] : memref<128x128xf32, #tpu.memory_space<vmem>>, vector<128x128xf32>
    %cst_8 = arith.constant dense<0.000000e+00> : vector<8x128xf32>
    %9 = tpu.matmul %7, %8, %cst_8 {dimension_numbers = #tpu.dot_dimension_numbers<[1], [0], [0], [1], [0, 0, 1, 1], [], []>} : vector<8x128xf32>, vector<128x128xf32>, vector<8x128xf32> -> vector<8x128xf32>
    %c0_9 = arith.constant 0 : index
    %c0_10 = arith.constant 0 : index
    %10 = vector.load %arg5[%c0_9, %c0_10] : memref<1x128xf32, #tpu.memory_space<vmem>>, vector<1x128xf32>
    %11 = vector.broadcast %10 : vector<1x128xf32> to vector<8x128xf32>
    %12 = arith.addf %9, %11 : vector<8x128xf32>
    %cst_11 = arith.constant 0.000000e+00 : f32
    %13 = vector.broadcast %cst_11 : f32 to vector<8x128xf32>
    %14 = arith.maximumf %12, %13 : vector<8x128xf32>
    %c0_12 = arith.constant 0 : index
    %c0_13 = arith.constant 0 : index
    %15 = vector.load %arg6[%c0_12, %c0_13] : memref<128x128xf32, #tpu.memory_space<vmem>>, vector<128x128xf32>
    %cst_14 = arith.constant dense<0.000000e+00> : vector<8x128xf32>
    %16 = tpu.matmul %14, %15, %cst_14 {dimension_numbers = #tpu.dot_dimension_numbers<[1], [0], [0], [1], [0, 0, 1, 1], [], []>} : vector<8x128xf32>, vector<128x128xf32>, vector<8x128xf32> -> vector<8x128xf32>
    %c0_15 = arith.constant 0 : index
    %c0_16 = arith.constant 0 : index
    %17 = vector.load %arg7[%c0_15, %c0_16] : memref<1x128xf32, #tpu.memory_space<vmem>>, vector<1x128xf32>
    %18 = vector.broadcast %17 : vector<1x128xf32> to vector<8x128xf32>
    %19 = arith.addf %16, %18 : vector<8x128xf32>
    %c0_17 = arith.constant 0 : index
    %c0_18 = arith.constant 0 : index
    %20 = vector.load %arg8[%c0_17, %c0_18] : memref<8x128xf32, #tpu.memory_space<vmem>>, vector<8x128xf32>
    tpu.vector_store %arg8[%c0_17, %c0_18], %19 {strides = array<i32>} : memref<8x128xf32, #tpu.memory_space<vmem>>, vector<8x128xf32>,
    return
  }
  func.func @transform_0(%arg0: i32) -> (i32, i32) {
    %c0_i32 = arith.constant 0 : i32
    %c0_i32_0 = arith.constant 0 : i32
    return %arg0, %c0_i32 : i32, i32
  }
  func.func @transform_1(%arg0: i32) -> (i32, i32) {
    %c0_i32 = arith.constant 0 : i32
    %c0_i32_0 = arith.constant 0 : i32
    %c0_i32_1 = arith.constant 0 : i32
    return %c0_i32, %c0_i32_0 : i32, i32
  }
  func.func @transform_2(%arg0: i32) -> (i32, i32) {
    %c0_i32 = arith.constant 0 : i32
    %c0_i32_0 = arith.constant 0 : i32
    %c0_i32_1 = arith.constant 0 : i32
    return %c0_i32, %c0_i32_0 : i32, i32
  }
  func.func @transform_3(%arg0: i32) -> (i32, i32) {
    %c0_i32 = arith.constant 0 : i32
    %c0_i32_0 = arith.constant 0 : i32
    %c0_i32_1 = arith.constant 0 : i32
    return %c0_i32, %c0_i32_0 : i32, i32
  }
  func.func @transform_4(%arg0: i32) -> (i32, i32) {
    %c0_i32 = arith.constant 0 : i32
    %c0_i32_0 = arith.constant 0 : i32
    %c0_i32_1 = arith.constant 0 : i32
    return %c0_i32, %c0_i32_0 : i32, i32
  }
  func.func @transform_5(%arg0: i32) -> (i32, i32) {
    %c0_i32 = arith.constant 0 : i32
    %c0_i32_0 = arith.constant 0 : i32
    %c0_i32_1 = arith.constant 0 : i32
    return %c0_i32, %c0_i32_0 : i32, i32
  }
  func.func @transform_6(%arg0: i32) -> (i32, i32) {
    %c0_i32 = arith.constant 0 : i32
    %c0_i32_0 = arith.constant 0 : i32
    %c0_i32_1 = arith.constant 0 : i32
    return %c0_i32, %c0_i32_0 : i32, i32
  }
  func.func @transform_7(%arg0: i32) -> (i32, i32) {
    %c0_i32 = arith.constant 0 : i32
    %c0_i32_0 = arith.constant 0 : i32
    return %arg0, %c0_i32 : i32, i32
  }
}

</mosaic_0001>

<llo_original>
// kernel: _forward.1
$region0: #{_forward.1}
  #allocation0 [shape = 'u32[]', space=smem, size = 0x4, offset = 0x4, fixed_abs, tag = 'smem constant byte address 0x4 - core index']
  #allocation1 [shape = 'u32[72,128]{1,0:T(1,128)}', space=vmem, size = 0x9000, scoped, tag = 'internal scratch']
  %s0 = inlined_call_operand.hbm [shape: f32[8,32], index: 0, kind: input, shape index: {}]
  %s1 = inlined_call_operand.hbm [shape: f32[32,128], index: 1, kind: input, shape index: {}]
  %s2 = inlined_call_operand.vmem [shape: f32[1,128], index: 2, kind: input, shape index: {}]
  %s3 = inlined_call_operand.hbm [shape: f32[128,128], index: 3, kind: input, shape index: {}]
  %s4 = inlined_call_operand.vmem [shape: f32[1,128], index: 4, kind: input, shape index: {}]
  %s5 = inlined_call_operand.hbm [shape: f32[128,128], index: 5, kind: input, shape index: {}]
  %s6 = inlined_call_operand.vmem [shape: f32[1,128], index: 6, kind: input, shape index: {}]
  %s7 = inlined_call_operand.vmem [shape: f32[8,128], index: 7, kind: output, shape index: {}]
  %s8 = sld [smem:[#allocation0]]
  $region54: #{_forward.1} parent=0
    _
  %s10 = ssub.s32 1, %s8
  %s11 = scalar_select 0, %s10, %s8
  $region1: #{_forward.1} parent=0
    #allocation2 [shape = 'u8[4096]{0}', space=vmem, size = 0x1000, scoped, tag = 'input window, operand 0, single buffered']
    #allocation3 [shape = 's32[1]{0}', space=sflag, size = 0x4, scoped, tag = 'scoped memory for _forward.1']
    #allocation4 [shape = 'u8[16384]{0}', space=vmem, size = 0x4000, scoped, tag = 'input window, operand 1, single buffered']
    #allocation5 [shape = 's32[1]{0}', space=sflag, size = 0x4, scoped, tag = 'scoped memory for _forward.1']
    #allocation6 [shape = 'u8[65536]{0}', space=vmem, size = 0x10000, scoped, tag = 'input window, operand 3, single buffered']
    #allocation7 [shape = 'u8[65536]{0}', space=vmem, size = 0x10000, scoped, tag = 'input window, operand 5, single buffered']
    #allocation8 [shape = 's32[1]{0}', space=sflag, size = 0x4, scoped, tag = 'scoped memory for _forward.1']
    %12 = vsyncpa [#allocation3], 0
    %13 = vsyncpa [#allocation5], 0
    %14 = vsyncpa [#allocation8], 0
    // Predicated region
    $region2: #{_forward.1} parent=1 // pred_check
      _
    $region3: #{_forward.1} parent=1 // pred_check_branch
      %16 = sbr.rel (0) target = $region5
    $region4: #{_forward.1} parent=1 // pred_region
      %18 = vsyncadd [#allocation3], 0
      %s20 = sshll.u32 %s0, 4
      %s21 = int_to_ptr.hbm [resolvable:$true] %s20
      %s22 = sshll.u32 [#allocation2], 4
      %s23 = int_to_ptr.vmem [resolvable:$true] %s22
      %25 = dma.hbm_to_vmem [thread:$0]  %s21, 128, %s23, [#allocation3]
    $region5: #{_forward.1} parent=1 // pred_fallthru
      _
    // Predicated region
    $region6: #{_forward.1} parent=1 // pred_check
      _
    $region7: #{_forward.1} parent=1 // pred_check_branch
      %27 = sbr.rel (0) target = $region9
    $region8: #{_forward.1} parent=1 // pred_region
      %29 = vsyncadd [#allocation5], 0
      %s30 = sshll.u32 %s1, 4
      %s31 = int_to_ptr.hbm [resolvable:$true] %s30
      %s32 = sshll.u32 [#allocation4], 4
      %s33 = int_to_ptr.vmem [resolvable:$true] %s32
      %38 = dma.hbm_to_vmem [thread:$0]  %s31, 512, %s33, [#allocation5], 128, 128, 8
    $region9: #{_forward.1} parent=1 // pred_fallthru
      _
    // Predicated region
    $region10: #{_forward.1} parent=1 // pred_check
      _
    $region11: #{_forward.1} parent=1 // pred_check_branch
      %40 = sbr.rel (0) target = $region13
    $region12: #{_forward.1} parent=1 // pred_region
      _
    $region13: #{_forward.1} parent=1 // pred_fallthru
      _
    // Predicated region
    $region14: #{_forward.1} parent=1 // pred_check
      _
    $region15: #{_forward.1} parent=1 // pred_check_branch
      %42 = sbr.rel (0) target = $region17
    $region16: #{_forward.1} parent=1 // pred_region
      %44 = vsyncadd [#allocation5], 0
      %s45 = sshll.u32 %s3, 4
      %s46 = int_to_ptr.hbm [resolvable:$true] %s45
      %s47 = sshll.u32 [#allocation6], 4
      %s48 = int_to_ptr.vmem [resolvable:$true] %s47
      %53 = dma.hbm_to_vmem [thread:$0]  %s46, 2048, %s48, [#allocation5], 128, 128, 8
    $region17: #{_forward.1} parent=1 // pred_fallthru
      _
    // Predicated region
    $region18: #{_forward.1} parent=1 // pred_check
      _
    $region19: #{_forward.1} parent=1 // pred_check_branch
      %55 = sbr.rel (0) target = $region21
    $region20: #{_forward.1} parent=1 // pred_region
      _
    $region21: #{_forward.1} parent=1 // pred_fallthru
      _
    // Predicated region
    $region22: #{_forward.1} parent=1 // pred_check
      _
    $region23: #{_forward.1} parent=1 // pred_check_branch
      %57 = sbr.rel (0) target = $region25
    $region24: #{_forward.1} parent=1 // pred_region
      %59 = vsyncadd [#allocation8], 0
      %s60 = sshll.u32 %s5, 4
      %s61 = int_to_ptr.hbm [resolvable:$true] %s60
      %s62 = sshll.u32 [#allocation7], 4
      %s63 = int_to_ptr.vmem [resolvable:$true] %s62
      %68 = dma.hbm_to_vmem [thread:$0]  %s61, 2048, %s63, [#allocation8], 128, 128, 8
    $region25: #{_forward.1} parent=1 // pred_fallthru
      _
    // Predicated region
    $region26: #{_forward.1} parent=1 // pred_check
      _
    $region27: #{_forward.1} parent=1 // pred_check_branch
      %70 = sbr.rel (0) target = $region29
    $region28: #{_forward.1} parent=1 // pred_region
      _
    $region29: #{_forward.1} parent=1 // pred_fallthru
      _
    // Predicated region
    $region30: #{_forward.1} parent=1 // pred_check
      _
    $region31: #{_forward.1} parent=1 // pred_check_branch
      %72 = sbr.rel (0) target = $region33
    $region32: #{_forward.1} parent=1 // pred_region
      %74 = dma.done [#allocation3], 128
    $region33: #{_forward.1} parent=1 // pred_fallthru
      _
    // Predicated region
    $region34: #{_forward.1} parent=1 // pred_check
      _
    $region35: #{_forward.1} parent=1 // pred_check_branch
      %76 = sbr.rel (0) target = $region37
    $region36: #{_forward.1} parent=1 // pred_region
      %78 = dma.done [#allocation5], 512
    $region37: #{_forward.1} parent=1 // pred_fallthru
      _
    // Predicated region
    $region38: #{_forward.1} parent=1 // pred_check
      _
    $region39: #{_forward.1} parent=1 // pred_check_branch
      %80 = sbr.rel (0) target = $region41
    $region40: #{_forward.1} parent=1 // pred_region
      %82 = dma.done [#allocation5], 2048
    $region41: #{_forward.1} parent=1 // pred_fallthru
      _
    // Predicated region
    $region42: #{_forward.1} parent=1 // pred_check
      _
    $region43: #{_forward.1} parent=1 // pred_check_branch
      %84 = sbr.rel (0) target = $region45
    $region44: #{_forward.1} parent=1 // pred_region
      %86 = dma.done [#allocation8], 2048
    $region45: #{_forward.1} parent=1 // pred_fallthru
      _
    %v87 = vld [vmem:[#allocation2] sm:$0xff]
    %v88 = vld [vmem:[#allocation4] sm:$0xff]
    %v89 = vld [vmem:[#allocation4 + $0x8] sm:$0xff]
    %v90 = vld [vmem:[#allocation4 + $0x10] sm:$0xff]
    %v91 = vld [vmem:[#allocation4 + $0x18] sm:$0xff]
    %v92 = vld [vmem:[%s2] sm:$0x1]
    %v94 = vperm.slane %v92, 0
    %vm96 = vcmask 261120
    %v98 = vsel %vm96, %v87, 0
    %100 = vmatpush.msra.mxu0 0.0
    %101 = vmatpush.msra.mxu0 0.0
    %102 = vmatpush.msra.mxu0 0.0
    %103 = vmatpush.msra.mxu0 0.0
    %104 = vmatpush.msra.mxu0 0.0
    %105 = vmatpush.msra.mxu0 0.0
    %106 = vmatpush.msra.mxu0 0.0
    %107 = vmatpush.msra.mxu0 0.0
    %108 = vmatpush.msra.mxu0 0.0
    %109 = vmatpush.msra.mxu0 0.0
    %110 = vmatpush.msra.mxu0 0.0
    %111 = vmatpush.msra.mxu0 0.0
    %112 = vmatpush.msra.mxu0 %v91
    %113 = vmatpush.msra.mxu0 %v90
    %114 = vmatpush.msra.mxu0 %v89
    %115 = vmatpush.msra.mxu0 %v88
    %116 = vmatmul.f32.gmra.mxu0 %v98
    %v117 = vpop.f32.mrf.mxu0
    %v118 = vadd.f32 %v94, %v117
    %119 = vdwg.mxu0
    %v120 = vmax.f32 %v118, 0.0
    %v121 = vld [vmem:[#allocation6] sm:$0xff]
    %v122 = vld [vmem:[#allocation6 + $0x8] sm:$0xff]
    %v123 = vld [vmem:[#allocation6 + $0x10] sm:$0xff]
    %v124 = vld [vmem:[#allocation6 + $0x18] sm:$0xff]
    %v125 = vld [vmem:[#allocation6 + $0x20] sm:$0xff]
    %v126 = vld [vmem:[#allocation6 + $0x28] sm:$0xff]
    %v127 = vld [vmem:[#allocation6 + $0x30] sm:$0xff]
    %v128 = vld [vmem:[#allocation6 + $0x38] sm:$0xff]
    %v129 = vld [vmem:[#allocation6 + $0x40] sm:$0xff]
    %v130 = vld [vmem:[#allocation6 + $0x48] sm:$0xff]
    %v131 = vld [vmem:[#allocation6 + $0x50] sm:$0xff]
    %v132 = vld [vmem:[#allocation6 + $0x58] sm:$0xff]
    %v133 = vld [vmem:[#allocation6 + $0x60] sm:$0xff]
    %v134 = vld [vmem:[#allocation6 + $0x68] sm:$0xff]
    %v135 = vld [vmem:[#allocation6 + $0x70] sm:$0xff]
    %v136 = vld [vmem:[#allocation6 + $0x78] sm:$0xff]
    %v137 = vld [vmem:[%s4] sm:$0x1]
    %v139 = vperm.slane %v137, 0
    %141 = vmatpush.msra.mxu0 %v136
    %142 = vmatpush.msra.mxu0 %v135
    %143 = vmatpush.msra.mxu0 %v134
    %144 = vmatpush.msra.mxu0 %v133
    %145 = vmatpush.msra.mxu0 %v132
    %146 = vmatpush.msra.mxu0 %v131
    %147 = vmatpush.msra.mxu0 %v130
    %148 = vmatpush.msra.mxu0 %v129
    %149 = vmatpush.msra.mxu0 %v128
    %150 = vmatpush.msra.mxu0 %v127
    %151 = vmatpush.msra.mxu0 %v126
    %152 = vmatpush.msra.mxu0 %v125
    %153 = vmatpush.msra.mxu0 %v124
    %154 = vmatpush.msra.mxu0 %v123
    %155 = vmatpush.msra.mxu0 %v122
    %156 = vmatpush.msra.mxu0 %v121
    %157 = vmatmul.f32.gmra.mxu0 %v120
    %v158 = vpop.f32.mrf.mxu0
    %v159 = vadd.f32 %v139, %v158
    %160 = vdwg.mxu0
    %v161 = vmax.f32 %v159, 0.0
    %v162 = vld [vmem:[#allocation7] sm:$0xff]
    %v163 = vld [vmem:[#allocation7 + $0x8] sm:$0xff]
    %v164 = vld [vmem:[#allocation7 + $0x10] sm:$0xff]
    %v165 = vld [vmem:[#allocation7 + $0x18] sm:$0xff]
    %v166 = vld [vmem:[#allocation7 + $0x20] sm:$0xff]
    %v167 = vld [vmem:[#allocation7 + $0x28] sm:$0xff]
    %v168 = vld [vmem:[#allocation7 + $0x30] sm:$0xff]
    %v169 = vld [vmem:[#allocation7 + $0x38] sm:$0xff]
    %v170 = vld [vmem:[#allocation7 + $0x40] sm:$0xff]
    %v171 = vld [vmem:[#allocation7 + $0x48] sm:$0xff]
    %v172 = vld [vmem:[#allocation7 + $0x50] sm:$0xff]
    %v173 = vld [vmem:[#allocation7 + $0x58] sm:$0xff]
    %v174 = vld [vmem:[#allocation7 + $0x60] sm:$0xff]
    %v175 = vld [vmem:[#allocation7 + $0x68] sm:$0xff]
    %v176 = vld [vmem:[#allocation7 + $0x70] sm:$0xff]
    %v177 = vld [vmem:[#allocation7 + $0x78] sm:$0xff]
    %v178 = vld [vmem:[%s6] sm:$0x1]
    %v180 = vperm.slane %v178, 0
    %182 = vmatpush.msra.mxu0 %v177
    %183 = vmatpush.msra.mxu0 %v176
    %184 = vmatpush.msra.mxu0 %v175
    %185 = vmatpush.msra.mxu0 %v174
    %186 = vmatpush.msra.mxu0 %v173
    %187 = vmatpush.msra.mxu0 %v172
    %188 = vmatpush.msra.mxu0 %v171
    %189 = vmatpush.msra.mxu0 %v170
    %190 = vmatpush.msra.mxu0 %v169
    %191 = vmatpush.msra.mxu0 %v168
    %192 = vmatpush.msra.mxu0 %v167
    %193 = vmatpush.msra.mxu0 %v166
    %194 = vmatpush.msra.mxu0 %v165
    %195 = vmatpush.msra.mxu0 %v164
    %196 = vmatpush.msra.mxu0 %v163
    %197 = vmatpush.msra.mxu0 %v162
    %198 = vmatmul.f32.gmra.mxu0 %v161
    %v199 = vpop.f32.mrf.mxu0
    %v200 = vadd.f32 %v180, %v199
    %201 = vdwg.mxu0
    %202 = vst [vmem:[%s7] sm:$0xff] %v200
    // Predicated region
    $region46: #{_forward.1} parent=1 // pred_check
      _
    $region47: #{_forward.1} parent=1 // pred_check_branch
      %204 = sbr.rel (0) target = $region49
    $region48: #{_forward.1} parent=1 // pred_region
      _
    $region49: #{_forward.1} parent=1 // pred_fallthru
      _
    // Predicated region
    $region50: #{_forward.1} parent=1 // pred_check
      _
    $region51: #{_forward.1} parent=1 // pred_check_branch
      %206 = sbr.rel (0) target = $region53
    $region52: #{_forward.1} parent=1 // pred_region
      _
    $region53: #{_forward.1} parent=1 // pred_fallthru
      _
    %207 = vsyncpa [#allocation3], 1
    %208 = vsyncpa [#allocation5], 1
    %209 = vsyncpa [#allocation8], 1

</llo_original>
